<compile_context>
chip_gen: v6e
topology: v6e:2x2x1
jax: 0.10.0
libtpu: 0.0.40
codegen_flags: <defaults>
</compile_context>

<pallas_src>
import functools

import jax
import jax.numpy as jnp
from jax.experimental import pallas as pl
from jax.experimental.pallas import tpu as pltpu

LANE = 128      # lane width (last dim of a vreg)
SUBLANE = 8     # f32/bf16-logical sublane granularity for block shapes
K_IN = 784      # fc1 in_features (28*28)
K_PAD = 896     # 784 padded up to 7*128
N_OUT = 10      # fc2 out_features
N_PAD = 128     # out_features padded to one full lane group


def _round_up(x, m):
    return (x + m - 1) // m * m


# ---------------------------------------------------------------------------
# Kernel: one batch tile, both layers fused.  All operands are lane-dense.
# ---------------------------------------------------------------------------
def fc_one_kernel(x_ref, w1_ref, w2_ref, out_ref):
    # layer1: relu(x @ W1_t)  -> (TB, Hp), f32 accumulation on the MXU
    h = jnp.dot(x_ref[...], w1_ref[...], preferred_element_type=jnp.float32)
    h = jnp.maximum(h, 0.0).astype(jnp.bfloat16)
    # output layer: h @ W2_t -> (TB, 128), f32 accumulation
    out_ref[...] = jnp.dot(h, w2_ref[...], preferred_element_type=jnp.float32)


# ---------------------------------------------------------------------------
# One-time weight preparation: transpose, zero-pad to lane-dense, cast bf16.
#   w1 (H, 784)  ->  w1_t (896, Hp)   with Hp = round_up(H, 128)
#   w2 (10, H)   ->  w2_t (Hp, 128)
# Zero rows/cols contribute nothing numerically.
# ---------------------------------------------------------------------------
def prep_weights(w1, w2, dtype=jnp.bfloat16):
    H = w1.shape[0]
    assert w1.shape == (H, K_IN) and w2.shape == (N_OUT, H)
    Hp = _round_up(H, LANE)
    w1_t = jnp.zeros((K_PAD, Hp), dtype).at[:K_IN, :H].set(w1.T.astype(dtype))
    w2_t = jnp.zeros((Hp, N_PAD), dtype).at[:H, :N_OUT].set(w2.T.astype(dtype))
    return w1_t, w2_t


# ---------------------------------------------------------------------------
# Forward wrapper: flatten, pad batch + K, launch the batch-tiled kernel,
# slice the padded result back to (B, 10) float32.
# ---------------------------------------------------------------------------
@functools.partial(jax.jit, static_argnames=("tb",))
def fc_one_forward(x, w1_t, w2_t, *, tb=512):
    B = x.shape[0]
    x2d = x.reshape(B, -1)                 # glue: x.view(B, -1)
    assert x2d.shape[1] == K_IN, x2d.shape
    Hp = w1_t.shape[1]

    # Batch tile: at most `tb` rows, at least a sublane multiple of the batch.
    TB = min(tb, _round_up(B, SUBLANE))
    Bp = _round_up(B, TB)

    # Zero-pad batch (rows) and contraction dim (cols), cast to bf16.
    xp = jnp.zeros((Bp, K_PAD), jnp.bfloat16)
    xp = xp.at[:B, :K_IN].set(x2d.astype(jnp.bfloat16))

    out_padded = pl.pallas_call(
        fc_one_kernel,
        out_shape=jax.ShapeDtypeStruct((Bp, N_PAD), jnp.float32),
        grid_spec=pltpu.PrefetchScalarGridSpec(
            num_scalar_prefetch=0,
            grid=(Bp // TB,),
            in_specs=[
                # x: new batch tile every grid step
                pl.BlockSpec((TB, K_PAD), lambda i: (i, 0)),
                # weights: same block index every step -> stay VMEM-resident
                pl.BlockSpec((K_PAD, Hp), lambda i: (0, 0)),
                pl.BlockSpec((Hp, N_PAD), lambda i: (0, 0)),
            ],
            out_specs=pl.BlockSpec((TB, N_PAD), lambda i: (i, 0)),
        ),
        compiler_params=pltpu.CompilerParams(
            # Independent batch tiles -> shard across TensorCores (v7x: 2 TCs).
            dimension_semantics=("parallel",),
        ),
    )(xp, w1_t, w2_t)

    # Slice away batch and out_features padding; result is f32 like the module.
    return out_padded[:B, :N_OUT]


# ---------------------------------------------------------------------------
# Parameter init matching nn.Linear default U(-1/sqrt(fan_in), 1/sqrt(fan_in))
# ---------------------------------------------------------------------------
def init_params(H, key):
    k1, k2 = jax.random.split(key)
    bound1 = 1.0 / jnp.sqrt(float(K_IN))
    bound2 = 1.0 / jnp.sqrt(float(H))
    w1 = jax.random.uniform(k1, (H, K_IN), jnp.float32, -bound1, bound1)
    w2 = jax.random.uniform(k2, (N_OUT, H), jnp.float32, -bound2, bound2)
    return w1, w2


if __name__ == "__main__":
    key = jax.random.PRNGKey(0)
    k_x, k_p = jax.random.split(key)

    B, H = 2, 32
    # MNIST-style input implied by the 784-dim fc1: (B, 1, 28, 28)
    x = jax.random.normal(k_x, (B, 1, 28, 28), jnp.float32)
    w1, w2 = init_params(H, k_p)

    w1_t, w2_t = prep_weights(w1, w2)
    out = fc_one_forward(x, w1_t, w2_t)
    out = jax.block_until_ready(out)
    assert out.shape == (B, N_OUT)

    # Reference 1: same bf16 weights/inputs, f32 accumulation (tight check).
    x2d_bf = x.reshape(B, -1).astype(jnp.bfloat16)
    h_ref = jnp.maximum(
        jnp.dot(x2d_bf, w1.astype(jnp.bfloat16).T,
                preferred_element_type=jnp.float32), 0.0)
    ref_bf16 = jnp.dot(h_ref.astype(jnp.bfloat16), w2.astype(jnp.bfloat16).T,
                       preferred_element_type=jnp.float32)
    assert jnp.allclose(out, ref_bf16, atol=2e-3, rtol=2e-3), "mismatch vs bf16 reference"

    # Reference 2: full f32 math (loose check: bf16 rounding only).
    x2d = x.reshape(B, -1)
    ref_f32 = jnp.maximum(x2d @ w1.T, 0.0) @ w2.T
    assert jnp.allclose(out, ref_f32, atol=5e-2, rtol=5e-2), "mismatch vs f32 reference"

    print("KERNEL_OK")
</pallas_src>

<mosaic_0001>
module attributes {stable_mosaic.version = 11 : i64} {
  func.func @fc_one_kernel(%arg0: i32, %arg1: memref<8x896xbf16, #tpu.memory_space<vmem>>, %arg2: memref<896x128xbf16, #tpu.memory_space<vmem>>, %arg3: memref<128x128xbf16, #tpu.memory_space<vmem>>, %arg4: memref<8x128xf32, #tpu.memory_space<vmem>>) attributes {dimension_semantics = [#tpu.dimension_semantics<parallel>], iteration_bounds = array<i64: 1>, scalar_prefetch = 0 : i64, scratch_operands = 0 : i64, tpu.core_type = #tpu.core_type<tc>, window_params = [{transform_indices = @transform_0, window_bounds = array<i64: 8, 896>}, {pipeline_mode = #tpu.pipeline_mode<synchronous>, transform_indices = @transform_1, window_bounds = array<i64: 896, 128>}, {pipeline_mode = #tpu.pipeline_mode<synchronous>, transform_indices = @transform_2, window_bounds = array<i64: 128, 128>}, {transform_indices = @transform_3, window_bounds = array<i64: 8, 128>}]} {
    %c0 = arith.constant 0 : index
    %c0_0 = arith.constant 0 : index
    %0 = vector.load %arg1[%c0, %c0_0] : memref<8x896xbf16, #tpu.memory_space<vmem>>, vector<8x896xbf16>
    %c0_1 = arith.constant 0 : index
    %c0_2 = arith.constant 0 : index
    %1 = vector.load %arg2[%c0_1, %c0_2] : memref<896x128xbf16, #tpu.memory_space<vmem>>, vector<896x128xbf16>
    %cst = arith.constant dense<0.000000e+00> : vector<8x128xf32>
    %2 = tpu.matmul %0, %1, %cst {dimension_numbers = #tpu.dot_dimension_numbers<[1], [0], [0], [1], [0, 0, 1, 1], [], []>} : vector<8x896xbf16>, vector<896x128xbf16>, vector<8x128xf32> -> vector<8x128xf32>
    %cst_3 = arith.constant 0.000000e+00 : f32
    %3 = vector.broadcast %cst_3 : f32 to vector<8x128xf32>
    %4 = arith.maximumf %2, %3 : vector<8x128xf32>
    %5 = arith.truncf %4 : vector<8x128xf32> to vector<8x128xbf16>
    %c0_4 = arith.constant 0 : index
    %c0_5 = arith.constant 0 : index
    %6 = vector.load %arg3[%c0_4, %c0_5] : memref<128x128xbf16, #tpu.memory_space<vmem>>, vector<128x128xbf16>
    %cst_6 = arith.constant dense<0.000000e+00> : vector<8x128xf32>
    %7 = tpu.matmul %5, %6, %cst_6 {dimension_numbers = #tpu.dot_dimension_numbers<[1], [0], [0], [1], [0, 0, 1, 1], [], []>} : vector<8x128xbf16>, vector<128x128xbf16>, vector<8x128xf32> -> vector<8x128xf32>
    %c0_7 = arith.constant 0 : index
    %c0_8 = arith.constant 0 : index
    %8 = vector.load %arg4[%c0_7, %c0_8] : memref<8x128xf32, #tpu.memory_space<vmem>>, vector<8x128xf32>
    tpu.vector_store %arg4[%c0_7, %c0_8], %7 {strides = array<i32>} : memref<8x128xf32, #tpu.memory_space<vmem>>, vector<8x128xf32>,
    return
  }
  func.func @transform_0(%arg0: i32) -> (i32, i32) {
    %c0_i32 = arith.constant 0 : i32
    %c0_i32_0 = arith.constant 0 : i32
    return %arg0, %c0_i32 : i32, i32
  }
  func.func @transform_1(%arg0: i32) -> (i32, i32) {
    %c0_i32 = arith.constant 0 : i32
    %c0_i32_0 = arith.constant 0 : i32
    %c0_i32_1 = arith.constant 0 : i32
    return %c0_i32, %c0_i32_0 : i32, i32
  }
  func.func @transform_2(%arg0: i32) -> (i32, i32) {
    %c0_i32 = arith.constant 0 : i32
    %c0_i32_0 = arith.constant 0 : i32
    %c0_i32_1 = arith.constant 0 : i32
    return %c0_i32, %c0_i32_0 : i32, i32
  }
  func.func @transform_3(%arg0: i32) -> (i32, i32) {
    %c0_i32 = arith.constant 0 : i32
    %c0_i32_0 = arith.constant 0 : i32
    return %arg0, %c0_i32 : i32, i32
  }
}

</mosaic_0001>

<llo_original>
// kernel: fc_one_forward.1
$region0: #{fc_one_forward.1}
  #allocation0 [shape = 'u32[]', space=smem, size = 0x4, offset = 0x4, fixed_abs, tag = 'smem constant byte address 0x4 - core index']
  #allocation1 [shape = 'u32[144,128]{1,0:T(1,128)}', space=vmem, size = 0x12000, scoped, tag = 'internal scratch']
  %s0 = inlined_call_operand.vmem [shape: bf16[8,896], index: 0, kind: input, shape index: {}]
  %s1 = inlined_call_operand.hbm [shape: bf16[896,128], index: 1, kind: input, shape index: {}]
  %s2 = inlined_call_operand.vmem [shape: bf16[128,128], index: 2, kind: input, shape index: {}]
  %s3 = inlined_call_operand.vmem [shape: f32[8,128], index: 3, kind: output, shape index: {}]
  %s4 = sld [smem:[#allocation0]]
  $region26: #{fc_one_forward.1} parent=0
    _
  %s6 = ssub.s32 1, %s4
  %s7 = scalar_select 0, %s6, %s4
  $region1: #{fc_one_forward.1} parent=0
    #allocation2 [shape = 'u8[229376]{0}', space=vmem, size = 0x38000, scoped, tag = 'input window, operand 1, single buffered']
    #allocation3 [shape = 's32[1]{0}', space=sflag, size = 0x4, scoped, tag = 'scoped memory for fc_one_forward.1']
    %8 = vsyncpa [#allocation3], 0
    // Predicated region
    $region2: #{fc_one_forward.1} parent=1 // pred_check
      _
    $region3: #{fc_one_forward.1} parent=1 // pred_check_branch
      %10 = sbr.rel (0) target = $region5
    $region4: #{fc_one_forward.1} parent=1 // pred_region
      _
    $region5: #{fc_one_forward.1} parent=1 // pred_fallthru
      _
    // Predicated region
    $region6: #{fc_one_forward.1} parent=1 // pred_check
      _
    $region7: #{fc_one_forward.1} parent=1 // pred_check_branch
      %12 = sbr.rel (0) target = $region9
    $region8: #{fc_one_forward.1} parent=1 // pred_region
      %s14 = ssub.s32 7168, 7168
      %15 = vsyncadd [#allocation3], %s14
      %s16 = sshll.u32 [#allocation2], 4
      %s17 = int_to_ptr.vmem [resolvable:$true] %s16
      %22 = dma.hbm_to_vmem [thread:$0]  %s1, 7168, %s17, [#allocation3], 64, 64, 4
    $region9: #{fc_one_forward.1} parent=1 // pred_fallthru
      _
    // Predicated region
    $region10: #{fc_one_forward.1} parent=1 // pred_check
      _
    $region11: #{fc_one_forward.1} parent=1 // pred_check_branch
      %24 = sbr.rel (0) target = $region13
    $region12: #{fc_one_forward.1} parent=1 // pred_region
      _
    $region13: #{fc_one_forward.1} parent=1 // pred_fallthru
      _
    // Predicated region
    $region14: #{fc_one_forward.1} parent=1 // pred_check
      _
    $region15: #{fc_one_forward.1} parent=1 // pred_check_branch
      %26 = sbr.rel (0) target = $region17
    $region16: #{fc_one_forward.1} parent=1 // pred_region
      %27 = dma.done [#allocation3], 7168
    $region17: #{fc_one_forward.1} parent=1 // pred_fallthru
      _
    %v29 = vld [vmem:[%s0] sm:$0xff]
    %v30 = vld [vmem:[%s0 + $0x8] sm:$0xff]
    %v31 = vld [vmem:[%s0 + $0x10] sm:$0xff]
    %v32 = vld [vmem:[%s0 + $0x18] sm:$0xf]
    %v33 = vld [vmem:[#allocation2] sm:$0xf]
    %v34 = vld [vmem:[#allocation2 + $0x4] sm:$0xf]
    %v35 = vld [vmem:[#allocation2 + $0x8] sm:$0xf]
    %v36 = vld [vmem:[#allocation2 + $0xc] sm:$0xf]
    %v37 = vld [vmem:[#allocation2 + $0x10] sm:$0xf]
    %v38 = vld [vmem:[#allocation2 + $0x14] sm:$0xf]
    %v39 = vld [vmem:[#allocation2 + $0x18] sm:$0xf]
    %v40 = vld [vmem:[#allocation2 + $0x1c] sm:$0xf]
    %v41 = vld [vmem:[#allocation2 + $0x20] sm:$0xf]
    %v42 = vld [vmem:[#allocation2 + $0x24] sm:$0xf]
    %v43 = vld [vmem:[#allocation2 + $0x28] sm:$0xf]
    %v44 = vld [vmem:[#allocation2 + $0x2c] sm:$0xf]
    %v45 = vld [vmem:[#allocation2 + $0x30] sm:$0xf]
    %v46 = vld [vmem:[#allocation2 + $0x34] sm:$0xf]
    %v47 = vld [vmem:[#allocation2 + $0x38] sm:$0xf]
    %v48 = vld [vmem:[#allocation2 + $0x3c] sm:$0xf]
    %v49 = vld [vmem:[#allocation2 + $0x40] sm:$0xf]
    %v50 = vld [vmem:[#allocation2 + $0x44] sm:$0xf]
    %v51 = vld [vmem:[#allocation2 + $0x48] sm:$0xf]
    %v52 = vld [vmem:[#allocation2 + $0x4c] sm:$0xf]
    %v53 = vld [vmem:[#allocation2 + $0x50] sm:$0xf]
    %v54 = vld [vmem:[#allocation2 + $0x54] sm:$0xf]
    %v55 = vld [vmem:[#allocation2 + $0x58] sm:$0xf]
    %v56 = vld [vmem:[#allocation2 + $0x5c] sm:$0xf]
    %v57 = vld [vmem:[#allocation2 + $0x60] sm:$0xf]
    %v58 = vld [vmem:[#allocation2 + $0x64] sm:$0xf]
    %v59 = vld [vmem:[#allocation2 + $0x68] sm:$0xf]
    %v60 = vld [vmem:[#allocation2 + $0x6c] sm:$0xf]
    %v61 = vld [vmem:[#allocation2 + $0x70] sm:$0xf]
    %v62 = vld [vmem:[#allocation2 + $0x74] sm:$0xf]
    %v63 = vld [vmem:[#allocation2 + $0x78] sm:$0xf]
    %v64 = vld [vmem:[#allocation2 + $0x7c] sm:$0xf]
    %v65 = vld [vmem:[#allocation2 + $0x80] sm:$0xf]
    %v66 = vld [vmem:[#allocation2 + $0x84] sm:$0xf]
    %v67 = vld [vmem:[#allocation2 + $0x88] sm:$0xf]
    %v68 = vld [vmem:[#allocation2 + $0x8c] sm:$0xf]
    %v69 = vld [vmem:[#allocation2 + $0x90] sm:$0xf]
    %v70 = vld [vmem:[#allocation2 + $0x94] sm:$0xf]
    %v71 = vld [vmem:[#allocation2 + $0x98] sm:$0xf]
    %v72 = vld [vmem:[#allocation2 + $0x9c] sm:$0xf]
    %v73 = vld [vmem:[#allocation2 + $0xa0] sm:$0xf]
    %v74 = vld [vmem:[#allocation2 + $0xa4] sm:$0xf]
    %v75 = vld [vmem:[#allocation2 + $0xa8] sm:$0xf]
    %v76 = vld [vmem:[#allocation2 + $0xac] sm:$0xf]
    %v77 = vld [vmem:[#allocation2 + $0xb0] sm:$0xf]
    %v78 = vld [vmem:[#allocation2 + $0xb4] sm:$0xf]
    %v79 = vld [vmem:[#allocation2 + $0xb8] sm:$0xf]
    %v80 = vld [vmem:[#allocation2 + $0xbc] sm:$0xf]
    %v81 = vld [vmem:[#allocation2 + $0xc0] sm:$0xf]
    %v82 = vld [vmem:[#allocation2 + $0xc4] sm:$0xf]
    %v83 = vld [vmem:[#allocation2 + $0xc8] sm:$0xf]
    %v84 = vld [vmem:[#allocation2 + $0xcc] sm:$0xf]
    %v85 = vld [vmem:[#allocation2 + $0xd0] sm:$0xf]
    %v86 = vld [vmem:[#allocation2 + $0xd4] sm:$0xf]
    %v87 = vld [vmem:[#allocation2 + $0xd8] sm:$0xf]
    %v88 = vld [vmem:[#allocation2 + $0xdc] sm:$0xf]
    %v89 = vld [vmem:[#allocation2 + $0xe0] sm:$0xf]
    %v90 = vld [vmem:[#allocation2 + $0xe4] sm:$0xf]
    %v91 = vld [vmem:[#allocation2 + $0xe8] sm:$0xf]
    %v92 = vld [vmem:[#allocation2 + $0xec] sm:$0xf]
    %v93 = vld [vmem:[#allocation2 + $0xf0] sm:$0xf]
    %v94 = vld [vmem:[#allocation2 + $0xf4] sm:$0xf]
    %v95 = vld [vmem:[#allocation2 + $0xf8] sm:$0xf]
    %v96 = vld [vmem:[#allocation2 + $0xfc] sm:$0xf]
    %v97 = vld [vmem:[#allocation2 + $0x100] sm:$0xf]
    %v98 = vld [vmem:[#allocation2 + $0x104] sm:$0xf]
    %v99 = vld [vmem:[#allocation2 + $0x108] sm:$0xf]
    %v100 = vld [vmem:[#allocation2 + $0x10c] sm:$0xf]
    %v101 = vld [vmem:[#allocation2 + $0x110] sm:$0xf]
    %v102 = vld [vmem:[#allocation2 + $0x114] sm:$0xf]
    %v103 = vld [vmem:[#allocation2 + $0x118] sm:$0xf]
    %v104 = vld [vmem:[#allocation2 + $0x11c] sm:$0xf]
    %v105 = vld [vmem:[#allocation2 + $0x120] sm:$0xf]
    %v106 = vld [vmem:[#allocation2 + $0x124] sm:$0xf]
    %v107 = vld [vmem:[#allocation2 + $0x128] sm:$0xf]
    %v108 = vld [vmem:[#allocation2 + $0x12c] sm:$0xf]
    %v109 = vld [vmem:[#allocation2 + $0x130] sm:$0xf]
    %v110 = vld [vmem:[#allocation2 + $0x134] sm:$0xf]
    %v111 = vld [vmem:[#allocation2 + $0x138] sm:$0xf]
    %v112 = vld [vmem:[#allocation2 + $0x13c] sm:$0xf]
    %v113 = vld [vmem:[#allocation2 + $0x140] sm:$0xf]
    %v114 = vld [vmem:[#allocation2 + $0x144] sm:$0xf]
    %v115 = vld [vmem:[#allocation2 + $0x148] sm:$0xf]
    %v116 = vld [vmem:[#allocation2 + $0x14c] sm:$0xf]
    %v117 = vld [vmem:[#allocation2 + $0x150] sm:$0xf]
    %v118 = vld [vmem:[#allocation2 + $0x154] sm:$0xf]
    %v119 = vld [vmem:[#allocation2 + $0x158] sm:$0xf]
    %v120 = vld [vmem:[#allocation2 + $0x15c] sm:$0xf]
    %v121 = vld [vmem:[#allocation2 + $0x160] sm:$0xf]
    %v122 = vld [vmem:[#allocation2 + $0x164] sm:$0xf]
    %v123 = vld [vmem:[#allocation2 + $0x168] sm:$0xf]
    %v124 = vld [vmem:[#allocation2 + $0x16c] sm:$0xf]
    %v125 = vld [vmem:[#allocation2 + $0x170] sm:$0xf]
    %v126 = vld [vmem:[#allocation2 + $0x174] sm:$0xf]
    %v127 = vld [vmem:[#allocation2 + $0x178] sm:$0xf]
    %v128 = vld [vmem:[#allocation2 + $0x17c] sm:$0xf]
    %v129 = vld [vmem:[#allocation2 + $0x180] sm:$0xf]
    %v130 = vld [vmem:[#allocation2 + $0x184] sm:$0xf]
    %v131 = vld [vmem:[#allocation2 + $0x188] sm:$0xf]
    %v132 = vld [vmem:[#allocation2 + $0x18c] sm:$0xf]
    %v133 = vld [vmem:[#allocation2 + $0x190] sm:$0xf]
    %v134 = vld [vmem:[#allocation2 + $0x194] sm:$0xf]
    %v135 = vld [vmem:[#allocation2 + $0x198] sm:$0xf]
    %v136 = vld [vmem:[#allocation2 + $0x19c] sm:$0xf]
    %v137 = vld [vmem:[#allocation2 + $0x1a0] sm:$0xf]
    %v138 = vld [vmem:[#allocation2 + $0x1a4] sm:$0xf]
    %v139 = vld [vmem:[#allocation2 + $0x1a8] sm:$0xf]
    %v140 = vld [vmem:[#allocation2 + $0x1ac] sm:$0xf]
    %v141 = vld [vmem:[#allocation2 + $0x1b0] sm:$0xf]
    %v142 = vld [vmem:[#allocation2 + $0x1b4] sm:$0xf]
    %v143 = vld [vmem:[#allocation2 + $0x1b8] sm:$0xf]
    %v144 = vld [vmem:[#allocation2 + $0x1bc] sm:$0xf]
    %v149 = vunpack.c.l.b16 %v29
    %v150 = vunpack.c.h.b16 %v29
    %v151 = vunpack.c.l.b16 %v30
    %v152 = vunpack.c.h.b16 %v30
    %v153 = vunpack.c.l.b16 %v31
    %v154 = vunpack.c.h.b16 %v31
    %v155 = vunpack.c.l.b16 %v32
    %v156 = vpack.c.b16 %v149, %v149
    %v157 = vpack.c.b16 %v150, %v150
    %v158 = vpack.c.b16 %v151, %v151
    %v159 = vpack.c.b16 %v152, %v152
    %v160 = vpack.c.b16 %v153, %v153
    %v161 = vpack.c.b16 %v154, %v154
    %v162 = vpack.c.b16 %v155, %v155
    %v282 = vunpack.c.l.b16 %v33
    %v283 = vunpack.c.l.b16 %v34
    %v284 = vunpack.c.l.b16 %v35
    %v285 = vunpack.c.l.b16 %v36
    %v286 = vunpack.c.l.b16 %v37
    %v287 = vunpack.c.l.b16 %v38
    %v288 = vunpack.c.l.b16 %v39
    %v289 = vunpack.c.l.b16 %v40
    %v290 = vunpack.c.l.b16 %v41
    %v291 = vunpack.c.l.b16 %v42
    %v292 = vunpack.c.l.b16 %v43
    %v293 = vunpack.c.l.b16 %v44
    %v294 = vunpack.c.l.b16 %v45
    %v295 = vunpack.c.l.b16 %v46
    %v296 = vunpack.c.l.b16 %v47
    %v297 = vunpack.c.l.b16 %v48
    %v298 = vunpack.c.l.b16 %v49
    %v299 = vunpack.c.l.b16 %v50
    %v300 = vunpack.c.l.b16 %v51
    %v301 = vunpack.c.l.b16 %v52
    %v302 = vunpack.c.l.b16 %v53
    %v303 = vunpack.c.l.b16 %v54
    %v304 = vunpack.c.l.b16 %v55
    %v305 = vunpack.c.l.b16 %v56
    %v306 = vunpack.c.l.b16 %v57
    %v307 = vunpack.c.l.b16 %v58
    %v308 = vunpack.c.l.b16 %v59
    %v309 = vunpack.c.l.b16 %v60
    %v310 = vunpack.c.l.b16 %v61
    %v311 = vunpack.c.l.b16 %v62
    %v312 = vunpack.c.l.b16 %v63
    %v313 = vunpack.c.l.b16 %v64
    %v314 = vunpack.c.l.b16 %v65
    %v315 = vunpack.c.l.b16 %v66
    %v316 = vunpack.c.l.b16 %v67
    %v317 = vunpack.c.l.b16 %v68
    %v318 = vunpack.c.l.b16 %v69
    %v319 = vunpack.c.l.b16 %v70
    %v320 = vunpack.c.l.b16 %v71
    %v321 = vunpack.c.l.b16 %v72
    %v322 = vunpack.c.l.b16 %v73
    %v323 = vunpack.c.l.b16 %v74
    %v324 = vunpack.c.l.b16 %v75
    %v325 = vunpack.c.l.b16 %v76
    %v326 = vunpack.c.l.b16 %v77
    %v327 = vunpack.c.l.b16 %v78
    %v328 = vunpack.c.l.b16 %v79
    %v329 = vunpack.c.l.b16 %v80
    %v330 = vunpack.c.l.b16 %v81
    %v331 = vunpack.c.l.b16 %v82
    %v332 = vunpack.c.l.b16 %v83
    %v333 = vunpack.c.l.b16 %v84
    %v334 = vunpack.c.l.b16 %v85
    %v335 = vunpack.c.l.b16 %v86
    %v336 = vunpack.c.l.b16 %v87
    %v337 = vunpack.c.l.b16 %v88
    %v338 = vunpack.c.l.b16 %v89
    %v339 = vunpack.c.l.b16 %v90
    %v340 = vunpack.c.l.b16 %v91
    %v341 = vunpack.c.l.b16 %v92
    %v342 = vunpack.c.l.b16 %v93
    %v343 = vunpack.c.l.b16 %v94
    %v344 = vunpack.c.l.b16 %v95
    %v345 = vunpack.c.l.b16 %v96
    %v346 = vunpack.c.l.b16 %v97
    %v347 = vunpack.c.l.b16 %v98
    %v348 = vunpack.c.l.b16 %v99
    %v349 = vunpack.c.l.b16 %v100
    %v350 = vunpack.c.l.b16 %v101
    %v351 = vunpack.c.l.b16 %v102
    %v352 = vunpack.c.l.b16 %v103
    %v353 = vunpack.c.l.b16 %v104
    %v354 = vunpack.c.l.b16 %v105
    %v355 = vunpack.c.l.b16 %v106
    %v356 = vunpack.c.l.b16 %v107
    %v357 = vunpack.c.l.b16 %v108
    %v358 = vunpack.c.l.b16 %v109
    %v359 = vunpack.c.l.b16 %v110
    %v360 = vunpack.c.l.b16 %v111
    %v361 = vunpack.c.l.b16 %v112
    %v362 = vunpack.c.l.b16 %v113
    %v363 = vunpack.c.l.b16 %v114
    %v364 = vunpack.c.l.b16 %v115
    %v365 = vunpack.c.l.b16 %v116
    %v366 = vunpack.c.l.b16 %v117
    %v367 = vunpack.c.l.b16 %v118
    %v368 = vunpack.c.l.b16 %v119
    %v369 = vunpack.c.l.b16 %v120
    %v370 = vunpack.c.l.b16 %v121
    %v371 = vunpack.c.l.b16 %v122
    %v372 = vunpack.c.l.b16 %v123
    %v373 = vunpack.c.l.b16 %v124
    %v374 = vunpack.c.l.b16 %v125
    %v375 = vunpack.c.l.b16 %v126
    %v376 = vunpack.c.l.b16 %v127
    %v377 = vunpack.c.l.b16 %v128
    %v378 = vunpack.c.l.b16 %v129
    %v379 = vunpack.c.l.b16 %v130
    %v380 = vunpack.c.l.b16 %v131
    %v381 = vunpack.c.l.b16 %v132
    %v382 = vunpack.c.l.b16 %v133
    %v383 = vunpack.c.l.b16 %v134
    %v384 = vunpack.c.l.b16 %v135
    %v385 = vunpack.c.l.b16 %v136
    %v386 = vunpack.c.l.b16 %v137
    %v387 = vunpack.c.l.b16 %v138
    %v388 = vunpack.c.l.b16 %v139
    %v389 = vunpack.c.l.b16 %v140
    %v390 = vunpack.c.l.b16 %v141
    %v391 = vunpack.c.l.b16 %v142
    %v392 = vunpack.c.l.b16 %v143
    %v393 = vunpack.c.l.b16 %v144
    %v394 = vpack.c.b16 %v283, %v282
    %v395 = vpack.c.b16 %v285, %v284
    %v396 = vpack.c.b16 %v287, %v286
    %v397 = vpack.c.b16 %v289, %v288
    %v398 = vpack.c.b16 %v291, %v290
    %v399 = vpack.c.b16 %v293, %v292
    %v400 = vpack.c.b16 %v295, %v294
    %v401 = vpack.c.b16 %v297, %v296
    %v402 = vpack.c.b16 %v299, %v298
    %v403 = vpack.c.b16 %v301, %v300
    %v404 = vpack.c.b16 %v303, %v302
    %v405 = vpack.c.b16 %v305, %v304
    %v406 = vpack.c.b16 %v307, %v306
    %v407 = vpack.c.b16 %v309, %v308
    %v408 = vpack.c.b16 %v311, %v310
    %v409 = vpack.c.b16 %v313, %v312
    %v410 = vpack.c.b16 %v315, %v314
    %v411 = vpack.c.b16 %v317, %v316
    %v412 = vpack.c.b16 %v319, %v318
    %v413 = vpack.c.b16 %v321, %v320
    %v414 = vpack.c.b16 %v323, %v322
    %v415 = vpack.c.b16 %v325, %v324
    %v416 = vpack.c.b16 %v327, %v326
    %v417 = vpack.c.b16 %v329, %v328
    %v418 = vpack.c.b16 %v331, %v330
    %v419 = vpack.c.b16 %v333, %v332
    %v420 = vpack.c.b16 %v335, %v334
    %v421 = vpack.c.b16 %v337, %v336
    %v422 = vpack.c.b16 %v339, %v338
    %v423 = vpack.c.b16 %v341, %v340
    %v424 = vpack.c.b16 %v343, %v342
    %v425 = vpack.c.b16 %v345, %v344
    %v426 = vpack.c.b16 %v347, %v346
    %v427 = vpack.c.b16 %v349, %v348
    %v428 = vpack.c.b16 %v351, %v350
    %v429 = vpack.c.b16 %v353, %v352
    %v430 = vpack.c.b16 %v355, %v354
    %v431 = vpack.c.b16 %v357, %v356
    %v432 = vpack.c.b16 %v359, %v358
    %v433 = vpack.c.b16 %v361, %v360
    %v434 = vpack.c.b16 %v363, %v362
    %v435 = vpack.c.b16 %v365, %v364
    %v436 = vpack.c.b16 %v367, %v366
    %v437 = vpack.c.b16 %v369, %v368
    %v438 = vpack.c.b16 %v371, %v370
    %v439 = vpack.c.b16 %v373, %v372
    %v440 = vpack.c.b16 %v375, %v374
    %v441 = vpack.c.b16 %v377, %v376
    %v442 = vpack.c.b16 %v379, %v378
    %v443 = vpack.c.b16 %v381, %v380
    %v444 = vpack.c.b16 %v383, %v382
    %v445 = vpack.c.b16 %v385, %v384
    %v446 = vpack.c.b16 %v387, %v386
    %v447 = vpack.c.b16 %v389, %v388
    %v448 = vpack.c.b16 %v391, %v390
    %v449 = vpack.c.b16 %v393, %v392
    %506 = vmatprep.subr.bf16.mxu0 0
    %507 = vmatpush1.bf16.msra.mxu0 %v401
    %508 = vmatprep.subr.bf16.mxu0 0
    %509 = vmatpush1.bf16.msra.mxu0 %v400
    %510 = vmatprep.subr.bf16.mxu0 0
    %511 = vmatpush1.bf16.msra.mxu0 %v399
    %512 = vmatprep.subr.bf16.mxu0 0
    %513 = vmatpush1.bf16.msra.mxu0 %v398
    %514 = vmatprep.subr.bf16.mxu0 0
    %515 = vmatpush1.bf16.msra.mxu0 %v397
    %516 = vmatprep.subr.bf16.mxu0 0
    %517 = vmatpush1.bf16.msra.mxu0 %v396
    %518 = vmatprep.subr.bf16.mxu0 0
    %519 = vmatpush1.bf16.msra.mxu0 %v395
    %520 = vmatprep.subr.bf16.mxu0 0
    %521 = vmatpush1.bf16.msra.mxu0 %v394
    %522 = vmatprep.subr.bf16.mxu0 0
    %523 = vmatpush2.bf16.msra.mxu0 %v409
    %524 = vmatprep.subr.bf16.mxu0 0
    %525 = vmatpush2.bf16.msra.mxu0 %v408
    %526 = vmatprep.subr.bf16.mxu0 0
    %527 = vmatpush2.bf16.msra.mxu0 %v407
    %528 = vmatprep.subr.bf16.mxu0 0
    %529 = vmatpush2.bf16.msra.mxu0 %v406
    %530 = vmatprep.subr.bf16.mxu0 0
    %531 = vmatpush2.bf16.msra.mxu0 %v405
    %532 = vmatprep.subr.bf16.mxu0 0
    %533 = vmatpush2.bf16.msra.mxu0 %v404
    %534 = vmatprep.subr.bf16.mxu0 0
    %535 = vmatpush2.bf16.msra.mxu0 %v403
    %536 = vmatprep.subr.bf16.mxu0 0
    %537 = vmatpush2.bf16.msra.mxu0 %v402
    %538 = vmatprep.mubr.bf16.mxu0 %v157
    %539 = vmatmul.mubr.bf16.gmra.mxu0 %v156
    %v540 = vpop.f32.mrf.mxu0
    %v541 = vadd.f32 0.0, %v540
    %v542 = vpop.f32.mrf.mxu0
    %v543 = vpop.f32.mrf.mxu0
    %v544 = vpop.f32.mrf.mxu0
    %545 = vdwg.mxu0
    %546 = vmatprep.subr.bf16.mxu0 0
    %547 = vmatpush1.bf16.msra.mxu0 %v417
    %548 = vmatprep.subr.bf16.mxu0 0
    %549 = vmatpush1.bf16.msra.mxu0 %v416
    %550 = vmatprep.subr.bf16.mxu0 0
    %551 = vmatpush1.bf16.msra.mxu0 %v415
    %552 = vmatprep.subr.bf16.mxu0 0
    %553 = vmatpush1.bf16.msra.mxu0 %v414
    %554 = vmatprep.subr.bf16.mxu0 0
    %555 = vmatpush1.bf16.msra.mxu0 %v413
    %556 = vmatprep.subr.bf16.mxu0 0
    %557 = vmatpush1.bf16.msra.mxu0 %v412
    %558 = vmatprep.subr.bf16.mxu0 0
    %559 = vmatpush1.bf16.msra.mxu0 %v411
    %560 = vmatprep.subr.bf16.mxu0 0
    %561 = vmatpush1.bf16.msra.mxu0 %v410
    %562 = vmatprep.subr.bf16.mxu0 0
    %563 = vmatpush2.bf16.msra.mxu0 %v425
    %564 = vmatprep.subr.bf16.mxu0 0
    %565 = vmatpush2.bf16.msra.mxu0 %v424
    %566 = vmatprep.subr.bf16.mxu0 0
    %567 = vmatpush2.bf16.msra.mxu0 %v423
    %568 = vmatprep.subr.bf16.mxu0 0
    %569 = vmatpush2.bf16.msra.mxu0 %v422
    %570 = vmatprep.subr.bf16.mxu0 0
    %571 = vmatpush2.bf16.msra.mxu0 %v421
    %572 = vmatprep.subr.bf16.mxu0 0
    %573 = vmatpush2.bf16.msra.mxu0 %v420
    %574 = vmatprep.subr.bf16.mxu0 0
    %575 = vmatpush2.bf16.msra.mxu0 %v419
    %576 = vmatprep.subr.bf16.mxu0 0
    %577 = vmatpush2.bf16.msra.mxu0 %v418
    %578 = vmatprep.mubr.bf16.mxu0 %v159
    %579 = vmatmul.mubr.bf16.gmra.mxu0 %v158
    %v580 = vpop.f32.mrf.mxu0
    %v581 = vadd.f32 %v541, %v580
    %v582 = vpop.f32.mrf.mxu0
    %v583 = vpop.f32.mrf.mxu0
    %v584 = vpop.f32.mrf.mxu0
    %585 = vdwg.mxu0
    %586 = vmatprep.subr.bf16.mxu0 0
    %587 = vmatpush1.bf16.msra.mxu0 %v433
    %588 = vmatprep.subr.bf16.mxu0 0
    %589 = vmatpush1.bf16.msra.mxu0 %v432
    %590 = vmatprep.subr.bf16.mxu0 0
    %591 = vmatpush1.bf16.msra.mxu0 %v431
    %592 = vmatprep.subr.bf16.mxu0 0
    %593 = vmatpush1.bf16.msra.mxu0 %v430
    %594 = vmatprep.subr.bf16.mxu0 0
    %595 = vmatpush1.bf16.msra.mxu0 %v429
    %596 = vmatprep.subr.bf16.mxu0 0
    %597 = vmatpush1.bf16.msra.mxu0 %v428
    %598 = vmatprep.subr.bf16.mxu0 0
    %599 = vmatpush1.bf16.msra.mxu0 %v427
    %600 = vmatprep.subr.bf16.mxu0 0
    %601 = vmatpush1.bf16.msra.mxu0 %v426
    %602 = vmatprep.subr.bf16.mxu0 0
    %603 = vmatpush2.bf16.msra.mxu0 %v441
    %604 = vmatprep.subr.bf16.mxu0 0
    %605 = vmatpush2.bf16.msra.mxu0 %v440
    %606 = vmatprep.subr.bf16.mxu0 0
    %607 = vmatpush2.bf16.msra.mxu0 %v439
    %608 = vmatprep.subr.bf16.mxu0 0
    %609 = vmatpush2.bf16.msra.mxu0 %v438
    %610 = vmatprep.subr.bf16.mxu0 0
    %611 = vmatpush2.bf16.msra.mxu0 %v437
    %612 = vmatprep.subr.bf16.mxu0 0
    %613 = vmatpush2.bf16.msra.mxu0 %v436
    %614 = vmatprep.subr.bf16.mxu0 0
    %615 = vmatpush2.bf16.msra.mxu0 %v435
    %616 = vmatprep.subr.bf16.mxu0 0
    %617 = vmatpush2.bf16.msra.mxu0 %v434
    %618 = vmatprep.mubr.bf16.mxu0 %v161
    %619 = vmatmul.mubr.bf16.gmra.mxu0 %v160
    %v620 = vpop.f32.mrf.mxu0
    %v621 = vadd.f32 %v581, %v620
    %v622 = vpop.f32.mrf.mxu0
    %v623 = vpop.f32.mrf.mxu0
    %v624 = vpop.f32.mrf.mxu0
    %625 = vdwg.mxu0
    %626 = vmatprep.subr.bf16.mxu0 0
    %627 = vmatpush1.bf16.msra.mxu0 %v449
    %628 = vmatprep.subr.bf16.mxu0 0
    %629 = vmatpush1.bf16.msra.mxu0 %v448
    %630 = vmatprep.subr.bf16.mxu0 0
    %631 = vmatpush1.bf16.msra.mxu0 %v447
    %632 = vmatprep.subr.bf16.mxu0 0
    %633 = vmatpush1.bf16.msra.mxu0 %v446
    %634 = vmatprep.subr.bf16.mxu0 0
    %635 = vmatpush1.bf16.msra.mxu0 %v445
    %636 = vmatprep.subr.bf16.mxu0 0
    %637 = vmatpush1.bf16.msra.mxu0 %v444
    %638 = vmatprep.subr.bf16.mxu0 0
    %639 = vmatpush1.bf16.msra.mxu0 %v443
    %640 = vmatprep.subr.bf16.mxu0 0
    %641 = vmatpush1.bf16.msra.mxu0 %v442
    %642 = vmatprep.subr.bf16.mxu0 0
    %643 = vmatpush2.bf16.msra.mxu0 0
    %644 = vmatprep.subr.bf16.mxu0 0
    %645 = vmatpush2.bf16.msra.mxu0 0
    %646 = vmatprep.subr.bf16.mxu0 0
    %647 = vmatpush2.bf16.msra.mxu0 0
    %648 = vmatprep.subr.bf16.mxu0 0
    %649 = vmatpush2.bf16.msra.mxu0 0
    %650 = vmatprep.subr.bf16.mxu0 0
    %651 = vmatpush2.bf16.msra.mxu0 0
    %652 = vmatprep.subr.bf16.mxu0 0
    %653 = vmatpush2.bf16.msra.mxu0 0
    %654 = vmatprep.subr.bf16.mxu0 0
    %655 = vmatpush2.bf16.msra.mxu0 0
    %656 = vmatprep.subr.bf16.mxu0 0
    %657 = vmatpush2.bf16.msra.mxu0 0
    %658 = vmatprep.mubr.bf16.mxu0 0
    %659 = vmatmul.mubr.bf16.gmra.mxu0 %v162
    %v660 = vpop.f32.mrf.mxu0
    %v661 = vadd.f32 %v621, %v660
    %v662 = vpop.f32.mrf.mxu0
    %v663 = vpop.f32.mrf.mxu0
    %v664 = vpop.f32.mrf.mxu0
    %665 = vdwg.mxu0
    %v666 = vmax.f32 %v661, 0.0
    %v667 = vpack.c.bf16 %v666, %v666
    %v668 = vld [vmem:[%s2] sm:$0xf]
    %v669 = vld [vmem:[%s2 + $0x4] sm:$0xf]
    %v670 = vld [vmem:[%s2 + $0x8] sm:$0xf]
    %v671 = vld [vmem:[%s2 + $0xc] sm:$0xf]
    %v672 = vld [vmem:[%s2 + $0x10] sm:$0xf]
    %v673 = vld [vmem:[%s2 + $0x14] sm:$0xf]
    %v674 = vld [vmem:[%s2 + $0x18] sm:$0xf]
    %v675 = vld [vmem:[%s2 + $0x1c] sm:$0xf]
    %v676 = vld [vmem:[%s2 + $0x20] sm:$0xf]
    %v677 = vld [vmem:[%s2 + $0x24] sm:$0xf]
    %v678 = vld [vmem:[%s2 + $0x28] sm:$0xf]
    %v679 = vld [vmem:[%s2 + $0x2c] sm:$0xf]
    %v680 = vld [vmem:[%s2 + $0x30] sm:$0xf]
    %v681 = vld [vmem:[%s2 + $0x34] sm:$0xf]
    %v682 = vld [vmem:[%s2 + $0x38] sm:$0xf]
    %v683 = vld [vmem:[%s2 + $0x3c] sm:$0xf]
    %v700 = vunpack.c.l.b16 %v668
    %v701 = vunpack.c.l.b16 %v669
    %v702 = vunpack.c.l.b16 %v670
    %v703 = vunpack.c.l.b16 %v671
    %v704 = vunpack.c.l.b16 %v672
    %v705 = vunpack.c.l.b16 %v673
    %v706 = vunpack.c.l.b16 %v674
    %v707 = vunpack.c.l.b16 %v675
    %v708 = vunpack.c.l.b16 %v676
    %v709 = vunpack.c.l.b16 %v677
    %v710 = vunpack.c.l.b16 %v678
    %v711 = vunpack.c.l.b16 %v679
    %v712 = vunpack.c.l.b16 %v680
    %v713 = vunpack.c.l.b16 %v681
    %v714 = vunpack.c.l.b16 %v682
    %v715 = vunpack.c.l.b16 %v683
    %v716 = vpack.c.b16 %v701, %v700
    %v717 = vpack.c.b16 %v703, %v702
    %v718 = vpack.c.b16 %v705, %v704
    %v719 = vpack.c.b16 %v707, %v706
    %v720 = vpack.c.b16 %v709, %v708
    %v721 = vpack.c.b16 %v711, %v710
    %v722 = vpack.c.b16 %v713, %v712
    %v723 = vpack.c.b16 %v715, %v714
    %732 = vmatprep.subr.bf16.mxu0 0
    %733 = vmatpush1.bf16.msra.mxu0 %v723
    %734 = vmatprep.subr.bf16.mxu0 0
    %735 = vmatpush1.bf16.msra.mxu0 %v722
    %736 = vmatprep.subr.bf16.mxu0 0
    %737 = vmatpush1.bf16.msra.mxu0 %v721
    %738 = vmatprep.subr.bf16.mxu0 0
    %739 = vmatpush1.bf16.msra.mxu0 %v720
    %740 = vmatprep.subr.bf16.mxu0 0
    %741 = vmatpush1.bf16.msra.mxu0 %v719
    %742 = vmatprep.subr.bf16.mxu0 0
    %743 = vmatpush1.bf16.msra.mxu0 %v718
    %744 = vmatprep.subr.bf16.mxu0 0
    %745 = vmatpush1.bf16.msra.mxu0 %v717
    %746 = vmatprep.subr.bf16.mxu0 0
    %747 = vmatpush1.bf16.msra.mxu0 %v716
    %748 = vmatprep.subr.bf16.mxu0 0
    %749 = vmatpush2.bf16.msra.mxu0 0
    %750 = vmatprep.subr.bf16.mxu0 0
    %751 = vmatpush2.bf16.msra.mxu0 0
    %752 = vmatprep.subr.bf16.mxu0 0
    %753 = vmatpush2.bf16.msra.mxu0 0
    %754 = vmatprep.subr.bf16.mxu0 0
    %755 = vmatpush2.bf16.msra.mxu0 0
    %756 = vmatprep.subr.bf16.mxu0 0
    %757 = vmatpush2.bf16.msra.mxu0 0
    %758 = vmatprep.subr.bf16.mxu0 0
    %759 = vmatpush2.bf16.msra.mxu0 0
    %760 = vmatprep.subr.bf16.mxu0 0
    %761 = vmatpush2.bf16.msra.mxu0 0
    %762 = vmatprep.subr.bf16.mxu0 0
    %763 = vmatpush2.bf16.msra.mxu0 0
    %764 = vmatprep.mubr.bf16.mxu0 0
    %765 = vmatmul.mubr.bf16.gmra.mxu0 %v667
    %v766 = vpop.f32.mrf.mxu0
    %v767 = vadd.f32 0.0, %v766
    %v768 = vpop.f32.mrf.mxu0
    %v769 = vpop.f32.mrf.mxu0
    %v770 = vpop.f32.mrf.mxu0
    %771 = vdwg.mxu0
    %772 = vst [vmem:[%s3] sm:$0xff] %v767
    // Predicated region
    $region18: #{fc_one_forward.1} parent=1 // pred_check
      _
    $region19: #{fc_one_forward.1} parent=1 // pred_check_branch
      %774 = sbr.rel (0) target = $region21
    $region20: #{fc_one_forward.1} parent=1 // pred_region
      _
    $region21: #{fc_one_forward.1} parent=1 // pred_fallthru
      _
    // Predicated region
    $region22: #{fc_one_forward.1} parent=1 // pred_check
      _
    $region23: #{fc_one_forward.1} parent=1 // pred_check_branch
      %776 = sbr.rel (0) target = $region25
    $region24: #{fc_one_forward.1} parent=1 // pred_region
      _
    $region25: #{fc_one_forward.1} parent=1 // pred_fallthru
      _
    %777 = vsyncpa [#allocation3], 1

</llo_original>
